<compile_context>
chip_gen: v6e
topology: v6e:2x2x1
jax: 0.10.0
libtpu: 0.0.40
codegen_flags: <defaults>
</compile_context>

<pallas_src>
import math
import jax
import jax.numpy as jnp
from jax.experimental import pallas as pl
from jax.experimental.pallas import tpu as pltpu


# ---------------------------------------------------------------------------
# Kernel
# ---------------------------------------------------------------------------
def _mflinear_kernel(x_ref, wm_ref, ewv_ref, bm_ref, ebv_ref, eps_ref, o_ref):
    # x_ref:   (tm, Din_p)    f32   M-tile of the input
    # wm_ref:  (Din_p, Dout_p) f32  W_mean^T           (resident)
    # ewv_ref: (Din_p, Dout_p) f32  exp(W_var)^T       (resident, precomputed)
    # bm_ref:  (1, Dout_p)    f32   b_mean             (resident)
    # ebv_ref: (1, Dout_p)    f32   exp(b_var)         (resident, precomputed)
    # eps_ref: (tm, Dout_p)   f32   N(0,1) noise tile
    # o_ref:   (tm, Dout_p)   f32   output tile
    x = x_ref[...]

    # output_mean = x @ W_mean.T + b_mean
    mean = jnp.dot(x, wm_ref[...], preferred_element_type=jnp.float32) + bm_ref[...]

    # output_var = (x**2) @ exp(W_var.T) + exp(b_var)   (exp hoisted to prep)
    var = (
        jnp.dot(x * x, ewv_ref[...], preferred_element_type=jnp.float32)
        + ebv_ref[...]
    )

    # reparameterized sample: mean + eps * sqrt(var)
    o_ref[...] = mean + eps_ref[...] * jnp.sqrt(var)


# ---------------------------------------------------------------------------
# Helpers
# ---------------------------------------------------------------------------
def _round_up(n, m):
    return pl.cdiv(n, m) * m


# Conservative resident-VMEM budget for tile sizing: fits v7x (64 MiB phys,
# 32 MiB default scoped) and leaves room for double-buffered streams.
_VMEM_BUDGET_BYTES = 24 * 1024 * 1024


def _choose_tile_m(m, din_p, dout_p):
    # Resident weight slabs (count x2 for pipeline buffering conservatism).
    weight_bytes = 2 * 2 * din_p * dout_p * 4
    remaining = max(_VMEM_BUDGET_BYTES - weight_bytes, 2 * 1024 * 1024)
    # Per-row bytes for the streamed tiles (x, eps, out), double-buffered.
    per_row = 2 * (din_p + 2 * dout_p) * 4
    tm = remaining // per_row
    tm = max(8, min(512, (tm // 8) * 8))       # multiple of 8 sublanes
    tm = min(tm, _round_up(m, 8))              # never bigger than the problem
    return int(tm)


def _vmem_requirement(tm, din_p, dout_p):
    weights = 2 * 2 * din_p * dout_p * 4
    tiles = 2 * tm * (din_p + 2 * dout_p) * 4
    biases = 2 * 2 * dout_p * 4
    return weights + tiles + biases


def prepare_mf_linear_params(W_mean, W_var, b_mean, b_var):
    """One-time parameter prep: transpose, exponentiate, pad to lane width.

    Returns (wm_t, exp_wv_t, bm, exp_bv) with shapes
    (Din_p, Dout_p), (Din_p, Dout_p), (1, Dout_p), (1, Dout_p).
    """
    dout, din = W_mean.shape
    din_p = int(_round_up(din, 128))
    dout_p = int(_round_up(dout, 128))

    wm_t = jnp.pad(
        W_mean.T.astype(jnp.float32), ((0, din_p - din), (0, dout_p - dout))
    )
    exp_wv_t = jnp.pad(
        jnp.exp(W_var.T.astype(jnp.float32)), ((0, din_p - din), (0, dout_p - dout))
    )
    bm = jnp.pad(b_mean.astype(jnp.float32), (0, dout_p - dout)).reshape(1, dout_p)
    exp_bv = jnp.pad(
        jnp.exp(b_var.astype(jnp.float32)), (0, dout_p - dout)
    ).reshape(1, dout_p)
    return wm_t, exp_wv_t, bm, exp_bv


# ---------------------------------------------------------------------------
# Forward
# ---------------------------------------------------------------------------
def mf_linear_forward(x, eps, wm_t, exp_wv_t, bm, exp_bv):
    """x: [S, B, Din], eps: [S, B, Dout], prepared params from
    prepare_mf_linear_params(). Returns [S, B, Dout] f32."""
    S, B, din = x.shape
    dout = eps.shape[-1]
    din_p, dout_p = wm_t.shape
    M = S * B

    tm = _choose_tile_m(M, din_p, dout_p)
    m_p = int(_round_up(M, tm))
    grid_m = m_p // tm

    x2d = jnp.pad(
        x.reshape(M, din).astype(jnp.float32), ((0, m_p - M), (0, din_p - din))
    )
    eps2d = jnp.pad(
        eps.reshape(M, dout).astype(jnp.float32), ((0, m_p - M), (0, dout_p - dout))
    )

    vmem_limit = int(min(max(2 * _vmem_requirement(tm, din_p, dout_p),
                             32 * 1024 * 1024),
                         64 * 1024 * 1024))

    out2d = pl.pallas_call(
        _mflinear_kernel,
        out_shape=jax.ShapeDtypeStruct((m_p, dout_p), jnp.float32),
        grid_spec=pltpu.PrefetchScalarGridSpec(
            num_scalar_prefetch=0,
            grid=(grid_m,),
            in_specs=[
                pl.BlockSpec((tm, din_p), lambda i: (i, 0)),       # x tile
                pl.BlockSpec((din_p, dout_p), lambda i: (0, 0)),   # W_mean^T (resident)
                pl.BlockSpec((din_p, dout_p), lambda i: (0, 0)),   # exp(W_var)^T (resident)
                pl.BlockSpec((1, dout_p), lambda i: (0, 0)),       # b_mean
                pl.BlockSpec((1, dout_p), lambda i: (0, 0)),       # exp(b_var)
                pl.BlockSpec((tm, dout_p), lambda i: (i, 0)),      # eps tile
            ],
            out_specs=pl.BlockSpec((tm, dout_p), lambda i: (i, 0)),
        ),
        compiler_params=pltpu.CompilerParams(
            dimension_semantics=("parallel",),   # M tiles independent -> both v7x TCs
            vmem_limit_bytes=vmem_limit,
        ),
    )(x2d, wm_t, exp_wv_t, bm, exp_bv, eps2d)

    return out2d[:M, :dout].reshape(S, B, dout)


# ---------------------------------------------------------------------------
# Parameter init (mirrors MFLinearLayer.reset_parameters)
# ---------------------------------------------------------------------------
def init_mf_linear_params(key, dim_in, dim_out, init_var=-7.0):
    k_w, k_b = jax.random.split(key)
    # kaiming_uniform_(W_mean, a=sqrt(5)) -> bound = sqrt(6/((1+a^2)*fan_in))
    #                                              = sqrt(1/fan_in)
    w_bound = math.sqrt(1.0 / dim_in)
    W_mean = jax.random.uniform(
        k_w, (dim_out, dim_in), jnp.float32, minval=-w_bound, maxval=w_bound
    )
    b_bound = 1.0 / math.sqrt(dim_in)
    b_mean = jax.random.uniform(
        k_b, (dim_out,), jnp.float32, minval=-b_bound, maxval=b_bound
    )
    W_var = jnp.full((dim_out, dim_in), init_var, jnp.float32)
    b_var = jnp.full((dim_out,), init_var, jnp.float32)
    return W_mean, b_mean, W_var, b_var


if __name__ == "__main__":
    key = jax.random.PRNGKey(0)
    k_param, k_x, k_eps = jax.random.split(key, 3)

    S, B, Din, Dout = 2, 8, 32, 32  # samples, batch, dim_in, dim_out

    W_mean, b_mean, W_var, b_var = init_mf_linear_params(k_param, Din, Dout)
    x = jax.random.normal(k_x, (S, B, Din), jnp.float32)
    # eps ~ N(0, 1) — generated outside the kernel for determinism
    eps = jax.random.normal(k_eps, (S, B, Dout), jnp.float32)

    # One-time parameter prep (transpose + exp + pad), reused across calls.
    wm_t, exp_wv_t, bm, exp_bv = prepare_mf_linear_params(W_mean, W_var, b_mean, b_var)

    out = mf_linear_forward(x, eps, wm_t, exp_wv_t, bm, exp_bv)
    out = jax.block_until_ready(out)

    # reference check in plain JAX
    mean_ref = x @ W_mean.T + b_mean[None, None, :]
    std_ref = jnp.sqrt((x ** 2) @ jnp.exp(W_var.T) + jnp.exp(b_var)[None, None, :])
    ref = mean_ref + eps * std_ref
    assert out.shape == (S, B, Dout)
    assert jnp.allclose(out, ref, atol=1e-5, rtol=1e-5)

    print("KERNEL_OK")
</pallas_src>

<mosaic_0001>
module attributes {stable_mosaic.version = 11 : i64} {
  func.func @_mflinear_kernel(%arg0: i32, %arg1: memref<16x128xf32, #tpu.memory_space<vmem>>, %arg2: memref<128x128xf32, #tpu.memory_space<vmem>>, %arg3: memref<128x128xf32, #tpu.memory_space<vmem>>, %arg4: memref<1x128xf32, #tpu.memory_space<vmem>>, %arg5: memref<1x128xf32, #tpu.memory_space<vmem>>, %arg6: memref<16x128xf32, #tpu.memory_space<vmem>>, %arg7: memref<16x128xf32, #tpu.memory_space<vmem>>) attributes {dimension_semantics = [#tpu.dimension_semantics<parallel>], iteration_bounds = array<i64: 1>, scalar_prefetch = 0 : i64, scratch_operands = 0 : i64, tpu.core_type = #tpu.core_type<tc>, window_params = [{transform_indices = @transform_0, window_bounds = array<i64: 16, 128>}, {pipeline_mode = #tpu.pipeline_mode<synchronous>, transform_indices = @transform_1, window_bounds = array<i64: 128, 128>}, {pipeline_mode = #tpu.pipeline_mode<synchronous>, transform_indices = @transform_2, window_bounds = array<i64: 128, 128>}, {pipeline_mode = #tpu.pipeline_mode<synchronous>, transform_indices = @transform_3, window_bounds = array<i64: 1, 128>}, {pipeline_mode = #tpu.pipeline_mode<synchronous>, transform_indices = @transform_4, window_bounds = array<i64: 1, 128>}, {transform_indices = @transform_5, window_bounds = array<i64: 16, 128>}, {transform_indices = @transform_6, window_bounds = array<i64: 16, 128>}]} {
    %c0 = arith.constant 0 : index
    %c0_0 = arith.constant 0 : index
    %0 = vector.load %arg1[%c0, %c0_0] : memref<16x128xf32, #tpu.memory_space<vmem>>, vector<16x128xf32>
    %c0_1 = arith.constant 0 : index
    %c0_2 = arith.constant 0 : index
    %1 = vector.load %arg2[%c0_1, %c0_2] : memref<128x128xf32, #tpu.memory_space<vmem>>, vector<128x128xf32>
    %cst = arith.constant dense<0.000000e+00> : vector<16x128xf32>
    %2 = tpu.matmul %0, %1, %cst {dimension_numbers = #tpu.dot_dimension_numbers<[1], [0], [0], [1], [0, 0, 1, 1], [], []>} : vector<16x128xf32>, vector<128x128xf32>, vector<16x128xf32> -> vector<16x128xf32>
    %c0_3 = arith.constant 0 : index
    %c0_4 = arith.constant 0 : index
    %3 = vector.load %arg4[%c0_3, %c0_4] : memref<1x128xf32, #tpu.memory_space<vmem>>, vector<1x128xf32>
    %4 = vector.broadcast %3 : vector<1x128xf32> to vector<16x128xf32>
    %5 = arith.addf %2, %4 : vector<16x128xf32>
    %6 = arith.mulf %0, %0 : vector<16x128xf32>
    %c0_5 = arith.constant 0 : index
    %c0_6 = arith.constant 0 : index
    %7 = vector.load %arg3[%c0_5, %c0_6] : memref<128x128xf32, #tpu.memory_space<vmem>>, vector<128x128xf32>
    %cst_7 = arith.constant dense<0.000000e+00> : vector<16x128xf32>
    %8 = tpu.matmul %6, %7, %cst_7 {dimension_numbers = #tpu.dot_dimension_numbers<[1], [0], [0], [1], [0, 0, 1, 1], [], []>} : vector<16x128xf32>, vector<128x128xf32>, vector<16x128xf32> -> vector<16x128xf32>
    %c0_8 = arith.constant 0 : index
    %c0_9 = arith.constant 0 : index
    %9 = vector.load %arg5[%c0_8, %c0_9] : memref<1x128xf32, #tpu.memory_space<vmem>>, vector<1x128xf32>
    %10 = vector.broadcast %9 : vector<1x128xf32> to vector<16x128xf32>
    %11 = arith.addf %8, %10 : vector<16x128xf32>
    %c0_10 = arith.constant 0 : index
    %c0_11 = arith.constant 0 : index
    %12 = vector.load %arg6[%c0_10, %c0_11] : memref<16x128xf32, #tpu.memory_space<vmem>>, vector<16x128xf32>
    %13 = math.sqrt %11 : vector<16x128xf32>
    %14 = arith.mulf %12, %13 : vector<16x128xf32>
    %15 = arith.addf %5, %14 : vector<16x128xf32>
    %c0_12 = arith.constant 0 : index
    %c0_13 = arith.constant 0 : index
    %16 = vector.load %arg7[%c0_12, %c0_13] : memref<16x128xf32, #tpu.memory_space<vmem>>, vector<16x128xf32>
    tpu.vector_store %arg7[%c0_12, %c0_13], %15 {strides = array<i32>} : memref<16x128xf32, #tpu.memory_space<vmem>>, vector<16x128xf32>,
    return
  }
  func.func @transform_0(%arg0: i32) -> (i32, i32) {
    %c0_i32 = arith.constant 0 : i32
    %c0_i32_0 = arith.constant 0 : i32
    return %arg0, %c0_i32 : i32, i32
  }
  func.func @transform_1(%arg0: i32) -> (i32, i32) {
    %c0_i32 = arith.constant 0 : i32
    %c0_i32_0 = arith.constant 0 : i32
    %c0_i32_1 = arith.constant 0 : i32
    return %c0_i32, %c0_i32_0 : i32, i32
  }
  func.func @transform_2(%arg0: i32) -> (i32, i32) {
    %c0_i32 = arith.constant 0 : i32
    %c0_i32_0 = arith.constant 0 : i32
    %c0_i32_1 = arith.constant 0 : i32
    return %c0_i32, %c0_i32_0 : i32, i32
  }
  func.func @transform_3(%arg0: i32) -> (i32, i32) {
    %c0_i32 = arith.constant 0 : i32
    %c0_i32_0 = arith.constant 0 : i32
    %c0_i32_1 = arith.constant 0 : i32
    return %c0_i32, %c0_i32_0 : i32, i32
  }
  func.func @transform_4(%arg0: i32) -> (i32, i32) {
    %c0_i32 = arith.constant 0 : i32
    %c0_i32_0 = arith.constant 0 : i32
    %c0_i32_1 = arith.constant 0 : i32
    return %c0_i32, %c0_i32_0 : i32, i32
  }
  func.func @transform_5(%arg0: i32) -> (i32, i32) {
    %c0_i32 = arith.constant 0 : i32
    %c0_i32_0 = arith.constant 0 : i32
    return %arg0, %c0_i32 : i32, i32
  }
  func.func @transform_6(%arg0: i32) -> (i32, i32) {
    %c0_i32 = arith.constant 0 : i32
    %c0_i32_0 = arith.constant 0 : i32
    return %arg0, %c0_i32 : i32, i32
  }
}

</mosaic_0001>

<llo_original>
// kernel: tpu_custom_call.1
$region0: #{tpu_custom_call.1}
  #allocation0 [shape = 'u32[]', space=smem, size = 0x4, offset = 0x4, fixed_abs, tag = 'smem constant byte address 0x4 - core index']
  #allocation1 [shape = 'u32[144,128]{1,0:T(1,128)}', space=vmem, size = 0x12000, scoped, tag = 'internal scratch']
  %s0 = inlined_call_operand.hbm [shape: f32[16,128], index: 0, kind: input, shape index: {}]
  %s1 = inlined_call_operand.hbm [shape: f32[128,128], index: 1, kind: input, shape index: {}]
  %s2 = inlined_call_operand.hbm [shape: f32[128,128], index: 2, kind: input, shape index: {}]
  %s3 = inlined_call_operand.vmem [shape: f32[1,128], index: 3, kind: input, shape index: {}]
  %s4 = inlined_call_operand.vmem [shape: f32[1,128], index: 4, kind: input, shape index: {}]
  %s5 = inlined_call_operand.hbm [shape: f32[16,128], index: 5, kind: input, shape index: {}]
  %s6 = inlined_call_operand.hbm [shape: f32[16,128], index: 6, kind: output, shape index: {}]
  %s7 = sld [smem:[#allocation0]]
  $region50: #{tpu_custom_call.1} parent=0
    _
  %s9 = ssub.s32 1, %s7
  %s10 = scalar_select 0, %s9, %s7
  $region1: #{tpu_custom_call.1} parent=0
    #allocation2 [shape = 'u8[8192]{0}', space=vmem, size = 0x2000, scoped, tag = 'input window, operand 0, single buffered']
    #allocation3 [shape = 's32[1]{0}', space=sflag, size = 0x4, scoped, tag = 'scoped memory for tpu_custom_call.1']
    #allocation4 [shape = 's32[1]{0}', space=sflag, size = 0x4, scoped, tag = 'scoped memory for tpu_custom_call.1']
    #allocation5 [shape = 'u8[65536]{0}', space=vmem, size = 0x10000, scoped, tag = 'input window, operand 1, single buffered']
    #allocation6 [shape = 's32[1]{0}', space=sflag, size = 0x4, scoped, tag = 'scoped memory for tpu_custom_call.1']
    #allocation7 [shape = 'u8[65536]{0}', space=vmem, size = 0x10000, scoped, tag = 'input window, operand 2, single buffered']
    #allocation8 [shape = 'u8[8192]{0}', space=vmem, size = 0x2000, scoped, tag = 'input window, operand 5, single buffered']
    #allocation9 [shape = 's32[1]{0}', space=sflag, size = 0x4, scoped, tag = 'scoped memory for tpu_custom_call.1']
    #allocation10 [shape = 'u8[8192]{0}', space=vmem, size = 0x2000, scoped, tag = 'output window, operand 0, single buffered']
    %11 = vsyncpa [#allocation3], 0
    %12 = vsyncpa [#allocation6], 0
    %13 = vsyncpa [#allocation9], 0
    %14 = vsyncpa [#allocation4], 0
    // Predicated region
    $region2: #{tpu_custom_call.1} parent=1 // pred_check
      _
    $region3: #{tpu_custom_call.1} parent=1 // pred_check_branch
      %16 = sbr.rel (0) target = $region5
    $region4: #{tpu_custom_call.1} parent=1 // pred_region
      %s18 = ssub.s32 256, 256
      %19 = vsyncadd [#allocation3], %s18
      %s20 = sshll.u32 [#allocation2], 4
      %s21 = int_to_ptr.vmem [resolvable:$true] %s20
      %26 = dma.hbm_to_vmem [thread:$0]  %s0, 256, %s21, [#allocation3], 128, 128, 8
    $region5: #{tpu_custom_call.1} parent=1 // pred_fallthru
      _
    // Predicated region
    $region6: #{tpu_custom_call.1} parent=1 // pred_check
      _
    $region7: #{tpu_custom_call.1} parent=1 // pred_check_branch
      %28 = sbr.rel (0) target = $region9
    $region8: #{tpu_custom_call.1} parent=1 // pred_region
      %s30 = ssub.s32 2048, 2048
      %31 = vsyncadd [#allocation6], %s30
      %s32 = sshll.u32 [#allocation5], 4
      %s33 = int_to_ptr.vmem [resolvable:$true] %s32
      %38 = dma.hbm_to_vmem [thread:$0]  %s1, 2048, %s33, [#allocation6], 128, 128, 8
    $region9: #{tpu_custom_call.1} parent=1 // pred_fallthru
      _
    // Predicated region
    $region10: #{tpu_custom_call.1} parent=1 // pred_check
      _
    $region11: #{tpu_custom_call.1} parent=1 // pred_check_branch
      %40 = sbr.rel (0) target = $region13
    $region12: #{tpu_custom_call.1} parent=1 // pred_region
      %s42 = ssub.s32 2048, 2048
      %43 = vsyncadd [#allocation6], %s42
      %s44 = sshll.u32 [#allocation7], 4
      %s45 = int_to_ptr.vmem [resolvable:$true] %s44
      %50 = dma.hbm_to_vmem [thread:$0]  %s2, 2048, %s45, [#allocation6], 128, 128, 8
    $region13: #{tpu_custom_call.1} parent=1 // pred_fallthru
      _
    // Predicated region
    $region14: #{tpu_custom_call.1} parent=1 // pred_check
      _
    $region15: #{tpu_custom_call.1} parent=1 // pred_check_branch
      %52 = sbr.rel (0) target = $region17
    $region16: #{tpu_custom_call.1} parent=1 // pred_region
      _
    $region17: #{tpu_custom_call.1} parent=1 // pred_fallthru
      _
    // Predicated region
    $region18: #{tpu_custom_call.1} parent=1 // pred_check
      _
    $region19: #{tpu_custom_call.1} parent=1 // pred_check_branch
      %54 = sbr.rel (0) target = $region21
    $region20: #{tpu_custom_call.1} parent=1 // pred_region
      _
    $region21: #{tpu_custom_call.1} parent=1 // pred_fallthru
      _
    // Predicated region
    $region22: #{tpu_custom_call.1} parent=1 // pred_check
      _
    $region23: #{tpu_custom_call.1} parent=1 // pred_check_branch
      %56 = sbr.rel (0) target = $region25
    $region24: #{tpu_custom_call.1} parent=1 // pred_region
      %s58 = ssub.s32 256, 256
      %59 = vsyncadd [#allocation9], %s58
      %s60 = sshll.u32 [#allocation8], 4
      %s61 = int_to_ptr.vmem [resolvable:$true] %s60
      %66 = dma.hbm_to_vmem [thread:$0]  %s5, 256, %s61, [#allocation9], 128, 128, 8
    $region25: #{tpu_custom_call.1} parent=1 // pred_fallthru
      _
    // Predicated region
    $region26: #{tpu_custom_call.1} parent=1 // pred_check
      _
    $region27: #{tpu_custom_call.1} parent=1 // pred_check_branch
      %68 = sbr.rel (0) target = $region29
    $region28: #{tpu_custom_call.1} parent=1 // pred_region
      %69 = dma.done [#allocation3], 256
    $region29: #{tpu_custom_call.1} parent=1 // pred_fallthru
      _
    // Predicated region
    $region30: #{tpu_custom_call.1} parent=1 // pred_check
      _
    $region31: #{tpu_custom_call.1} parent=1 // pred_check_branch
      %71 = sbr.rel (0) target = $region33
    $region32: #{tpu_custom_call.1} parent=1 // pred_region
      %72 = dma.done [#allocation6], 2048
    $region33: #{tpu_custom_call.1} parent=1 // pred_fallthru
      _
    // Predicated region
    $region34: #{tpu_custom_call.1} parent=1 // pred_check
      _
    $region35: #{tpu_custom_call.1} parent=1 // pred_check_branch
      %74 = sbr.rel (0) target = $region37
    $region36: #{tpu_custom_call.1} parent=1 // pred_region
      %75 = dma.done [#allocation6], 2048
    $region37: #{tpu_custom_call.1} parent=1 // pred_fallthru
      _
    // Predicated region
    $region38: #{tpu_custom_call.1} parent=1 // pred_check
      _
    $region39: #{tpu_custom_call.1} parent=1 // pred_check_branch
      %77 = sbr.rel (0) target = $region41
    $region40: #{tpu_custom_call.1} parent=1 // pred_region
      %78 = dma.done [#allocation9], 256
    $region41: #{tpu_custom_call.1} parent=1 // pred_fallthru
      _
    %v79 = vld [vmem:[#allocation2] sm:$0xff]
    %v80 = vld [vmem:[#allocation2 + $0x8] sm:$0xff]
    %v81 = vld [vmem:[#allocation5] sm:$0xff]
    %v82 = vld [vmem:[#allocation5 + $0x8] sm:$0xff]
    %v83 = vld [vmem:[#allocation5 + $0x10] sm:$0xff]
    %v84 = vld [vmem:[#allocation5 + $0x18] sm:$0xff]
    %v85 = vld [vmem:[#allocation5 + $0x20] sm:$0xff]
    %v86 = vld [vmem:[#allocation5 + $0x28] sm:$0xff]
    %v87 = vld [vmem:[#allocation5 + $0x30] sm:$0xff]
    %v88 = vld [vmem:[#allocation5 + $0x38] sm:$0xff]
    %v89 = vld [vmem:[#allocation5 + $0x40] sm:$0xff]
    %v90 = vld [vmem:[#allocation5 + $0x48] sm:$0xff]
    %v91 = vld [vmem:[#allocation5 + $0x50] sm:$0xff]
    %v92 = vld [vmem:[#allocation5 + $0x58] sm:$0xff]
    %v93 = vld [vmem:[#allocation5 + $0x60] sm:$0xff]
    %v94 = vld [vmem:[#allocation5 + $0x68] sm:$0xff]
    %v95 = vld [vmem:[#allocation5 + $0x70] sm:$0xff]
    %v96 = vld [vmem:[#allocation5 + $0x78] sm:$0xff]
    %v97 = vld [vmem:[%s3] sm:$0x1]
    %v99 = vlaneseq
    %v100 = vshrl.u32 %v99, 7
    %v101 = vsub.s32 0, %v100
    %v102 = vrot.slane %v97, %v101
    %104 = vmatprep.subr.mxu0 0.0
    %105 = vmatpush1.msra.mxu0 %v96
    %106 = vmatprep.subr.mxu0 0.0
    %107 = vmatpush1.msra.mxu0 %v95
    %108 = vmatprep.subr.mxu0 0.0
    %109 = vmatpush1.msra.mxu0 %v94
    %110 = vmatprep.subr.mxu0 0.0
    %111 = vmatpush1.msra.mxu0 %v93
    %112 = vmatprep.subr.mxu0 0.0
    %113 = vmatpush1.msra.mxu0 %v92
    %114 = vmatprep.subr.mxu0 0.0
    %115 = vmatpush1.msra.mxu0 %v91
    %116 = vmatprep.subr.mxu0 0.0
    %117 = vmatpush1.msra.mxu0 %v90
    %118 = vmatprep.subr.mxu0 0.0
    %119 = vmatpush1.msra.mxu0 %v89
    %120 = vmatprep.subr.mxu0 0.0
    %121 = vmatpush1.msra.mxu0 %v88
    %122 = vmatprep.subr.mxu0 0.0
    %123 = vmatpush1.msra.mxu0 %v87
    %124 = vmatprep.subr.mxu0 0.0
    %125 = vmatpush1.msra.mxu0 %v86
    %126 = vmatprep.subr.mxu0 0.0
    %127 = vmatpush1.msra.mxu0 %v85
    %128 = vmatprep.subr.mxu0 0.0
    %129 = vmatpush1.msra.mxu0 %v84
    %130 = vmatprep.subr.mxu0 0.0
    %131 = vmatpush1.msra.mxu0 %v83
    %132 = vmatprep.subr.mxu0 0.0
    %133 = vmatpush1.msra.mxu0 %v82
    %134 = vmatprep.subr.mxu0 0.0
    %135 = vmatpush1.msra.mxu0 %v81
    %136 = vmatprep.subr.mxu0 0.0
    %137 = vmatpush2.msra.mxu0 0.0
    %138 = vmatprep.subr.mxu0 0.0
    %139 = vmatpush2.msra.mxu0 0.0
    %140 = vmatprep.subr.mxu0 0.0
    %141 = vmatpush2.msra.mxu0 0.0
    %142 = vmatprep.subr.mxu0 0.0
    %143 = vmatpush2.msra.mxu0 0.0
    %144 = vmatprep.subr.mxu0 0.0
    %145 = vmatpush2.msra.mxu0 0.0
    %146 = vmatprep.subr.mxu0 0.0
    %147 = vmatpush2.msra.mxu0 0.0
    %148 = vmatprep.subr.mxu0 0.0
    %149 = vmatpush2.msra.mxu0 0.0
    %150 = vmatprep.subr.mxu0 0.0
    %151 = vmatpush2.msra.mxu0 0.0
    %152 = vmatprep.subr.mxu0 0.0
    %153 = vmatpush2.msra.mxu0 0.0
    %154 = vmatprep.subr.mxu0 0.0
    %155 = vmatpush2.msra.mxu0 0.0
    %156 = vmatprep.subr.mxu0 0.0
    %157 = vmatpush2.msra.mxu0 0.0
    %158 = vmatprep.subr.mxu0 0.0
    %159 = vmatpush2.msra.mxu0 0.0
    %160 = vmatprep.subr.mxu0 0.0
    %161 = vmatpush2.msra.mxu0 0.0
    %162 = vmatprep.subr.mxu0 0.0
    %163 = vmatpush2.msra.mxu0 0.0
    %164 = vmatprep.subr.mxu0 0.0
    %165 = vmatpush2.msra.mxu0 0.0
    %166 = vmatprep.subr.mxu0 0.0
    %167 = vmatpush2.msra.mxu0 0.0
    %168 = vmatprep.mubr.f32.mxu0 0.0
    %169 = vmatmul.mubr.f32.gmra.mxu0 %v79
    %v170 = vpop.f32.mrf.mxu0
    %v171 = vadd.f32 %v102, %v170
    %v172 = vpop.f32.mrf.mxu0
    %173 = vmatprep.mubr.f32.mxu0 0.0
    %174 = vmatmul.mubr.f32.gmra.mxu0 %v80
    %v175 = vpop.f32.mrf.mxu0
    %v176 = vadd.f32 %v102, %v175
    %v177 = vpop.f32.mrf.mxu0
    %178 = vdwg.mxu0
    %v179 = vmul.f32 %v79, %v79
    %v180 = vmul.f32 %v80, %v80
    %v181 = vld [vmem:[#allocation7] sm:$0xff]
    %v182 = vld [vmem:[#allocation7 + $0x8] sm:$0xff]
    %v183 = vld [vmem:[#allocation7 + $0x10] sm:$0xff]
    %v184 = vld [vmem:[#allocation7 + $0x18] sm:$0xff]
    %v185 = vld [vmem:[#allocation7 + $0x20] sm:$0xff]
    %v186 = vld [vmem:[#allocation7 + $0x28] sm:$0xff]
    %v187 = vld [vmem:[#allocation7 + $0x30] sm:$0xff]
    %v188 = vld [vmem:[#allocation7 + $0x38] sm:$0xff]
    %v189 = vld [vmem:[#allocation7 + $0x40] sm:$0xff]
    %v190 = vld [vmem:[#allocation7 + $0x48] sm:$0xff]
    %v191 = vld [vmem:[#allocation7 + $0x50] sm:$0xff]
    %v192 = vld [vmem:[#allocation7 + $0x58] sm:$0xff]
    %v193 = vld [vmem:[#allocation7 + $0x60] sm:$0xff]
    %v194 = vld [vmem:[#allocation7 + $0x68] sm:$0xff]
    %v195 = vld [vmem:[#allocation7 + $0x70] sm:$0xff]
    %v196 = vld [vmem:[#allocation7 + $0x78] sm:$0xff]
    %v197 = vld [vmem:[%s4] sm:$0x1]
    %v199 = vlaneseq
    %v200 = vshrl.u32 %v199, 7
    %v201 = vsub.s32 0, %v200
    %v202 = vrot.slane %v197, %v201
    %204 = vmatprep.subr.mxu0 0.0
    %205 = vmatpush1.msra.mxu0 %v196
    %206 = vmatprep.subr.mxu0 0.0
    %207 = vmatpush1.msra.mxu0 %v195
    %208 = vmatprep.subr.mxu0 0.0
    %209 = vmatpush1.msra.mxu0 %v194
    %210 = vmatprep.subr.mxu0 0.0
    %211 = vmatpush1.msra.mxu0 %v193
    %212 = vmatprep.subr.mxu0 0.0
    %213 = vmatpush1.msra.mxu0 %v192
    %214 = vmatprep.subr.mxu0 0.0
    %215 = vmatpush1.msra.mxu0 %v191
    %216 = vmatprep.subr.mxu0 0.0
    %217 = vmatpush1.msra.mxu0 %v190
    %218 = vmatprep.subr.mxu0 0.0
    %219 = vmatpush1.msra.mxu0 %v189
    %220 = vmatprep.subr.mxu0 0.0
    %221 = vmatpush1.msra.mxu0 %v188
    %222 = vmatprep.subr.mxu0 0.0
    %223 = vmatpush1.msra.mxu0 %v187
    %224 = vmatprep.subr.mxu0 0.0
    %225 = vmatpush1.msra.mxu0 %v186
    %226 = vmatprep.subr.mxu0 0.0
    %227 = vmatpush1.msra.mxu0 %v185
    %228 = vmatprep.subr.mxu0 0.0
    %229 = vmatpush1.msra.mxu0 %v184
    %230 = vmatprep.subr.mxu0 0.0
    %231 = vmatpush1.msra.mxu0 %v183
    %232 = vmatprep.subr.mxu0 0.0
    %233 = vmatpush1.msra.mxu0 %v182
    %234 = vmatprep.subr.mxu0 0.0
    %235 = vmatpush1.msra.mxu0 %v181
    %236 = vmatprep.subr.mxu0 0.0
    %237 = vmatpush2.msra.mxu0 0.0
    %238 = vmatprep.subr.mxu0 0.0
    %239 = vmatpush2.msra.mxu0 0.0
    %240 = vmatprep.subr.mxu0 0.0
    %241 = vmatpush2.msra.mxu0 0.0
    %242 = vmatprep.subr.mxu0 0.0
    %243 = vmatpush2.msra.mxu0 0.0
    %244 = vmatprep.subr.mxu0 0.0
    %245 = vmatpush2.msra.mxu0 0.0
    %246 = vmatprep.subr.mxu0 0.0
    %247 = vmatpush2.msra.mxu0 0.0
    %248 = vmatprep.subr.mxu0 0.0
    %249 = vmatpush2.msra.mxu0 0.0
    %250 = vmatprep.subr.mxu0 0.0
    %251 = vmatpush2.msra.mxu0 0.0
    %252 = vmatprep.subr.mxu0 0.0
    %253 = vmatpush2.msra.mxu0 0.0
    %254 = vmatprep.subr.mxu0 0.0
    %255 = vmatpush2.msra.mxu0 0.0
    %256 = vmatprep.subr.mxu0 0.0
    %257 = vmatpush2.msra.mxu0 0.0
    %258 = vmatprep.subr.mxu0 0.0
    %259 = vmatpush2.msra.mxu0 0.0
    %260 = vmatprep.subr.mxu0 0.0
    %261 = vmatpush2.msra.mxu0 0.0
    %262 = vmatprep.subr.mxu0 0.0
    %263 = vmatpush2.msra.mxu0 0.0
    %264 = vmatprep.subr.mxu0 0.0
    %265 = vmatpush2.msra.mxu0 0.0
    %266 = vmatprep.subr.mxu0 0.0
    %267 = vmatpush2.msra.mxu0 0.0
    %268 = vmatprep.mubr.f32.mxu0 0.0
    %269 = vmatmul.mubr.f32.gmra.mxu0 %v179
    %v270 = vpop.f32.mrf.mxu0
    %v271 = vadd.f32 %v202, %v270
    %v272 = vpop.f32.mrf.mxu0
    %273 = vmatprep.mubr.f32.mxu0 0.0
    %274 = vmatmul.mubr.f32.gmra.mxu0 %v180
    %v275 = vpop.f32.mrf.mxu0
    %v276 = vadd.f32 %v202, %v275
    %v277 = vpop.f32.mrf.mxu0
    %278 = vdwg.mxu0
    %v279 = vld [vmem:[#allocation8] sm:$0xff]
    %v280 = vld [vmem:[#allocation8 + $0x8] sm:$0xff]
    %v281 = vrsqrt.pop %v271
    %v282 = vmul.f32 %v271, %v281
    %vm283 = vcmp.eq.f32.partialorder %v271, inf
    %v284 = vsel %vm283, %v271, %v282
    %vm285 = vcmp.eq.f32.partialorder %v271, 0.0
    %v286 = vand.u32 %v271, 2147483648
    %v287 = vsel %vm285, %v286, %v284
    %v288 = vrsqrt.pop %v276
    %v289 = vmul.f32 %v276, %v288
    %vm290 = vcmp.eq.f32.partialorder %v276, inf
    %v291 = vsel %vm290, %v276, %v289
    %vm292 = vcmp.eq.f32.partialorder %v276, 0.0
    %v293 = vand.u32 %v276, 2147483648
    %v294 = vsel %vm292, %v293, %v291
    %v295 = vmul.f32 %v279, %v287
    %v296 = vmul.f32 %v280, %v294
    %v297 = vadd.f32 %v171, %v295
    %v298 = vadd.f32 %v176, %v296
    %299 = vst [vmem:[#allocation10] sm:$0xff] %v297
    %300 = vst [vmem:[#allocation10 + $0x8] sm:$0xff] %v298
    // Predicated region
    $region42: #{tpu_custom_call.1} parent=1 // pred_check
      _
    $region43: #{tpu_custom_call.1} parent=1 // pred_check_branch
      %302 = sbr.rel (0) target = $region45
    $region44: #{tpu_custom_call.1} parent=1 // pred_region
      %s304 = ssub.s32 256, 256
      %305 = vsyncadd [#allocation4], %s304
      %s306 = sshll.u32 [#allocation10], 4
      %s307 = int_to_ptr.vmem [resolvable:$true] %s306
      %312 = dma.vmem_to_hbm [thread:$0]  %s307, 256, %s6, [#allocation4], 128, 128, 8
    $region45: #{tpu_custom_call.1} parent=1 // pred_fallthru
      _
    // Predicated region
    $region46: #{tpu_custom_call.1} parent=1 // pred_check
      _
    $region47: #{tpu_custom_call.1} parent=1 // pred_check_branch
      %314 = sbr.rel (0) target = $region49
    $region48: #{tpu_custom_call.1} parent=1 // pred_region
      %315 = dma.done [#allocation4], 256
    $region49: #{tpu_custom_call.1} parent=1 // pred_fallthru
      _
    %316 = vsyncpa [#allocation3], 1
    %317 = vsyncpa [#allocation6], 1
    %318 = vsyncpa [#allocation9], 1
    %319 = vsyncpa [#allocation4], 1

</llo_original>
